<compile_context>
chip_gen: v6e
topology: v6e:2x2x1
jax: 0.10.0
libtpu: 0.0.40
codegen_flags: <defaults>
</compile_context>

<pallas_src>
import functools

import jax
import jax.numpy as jnp
from jax.experimental import pallas as pl
from jax.experimental.pallas import tpu as pltpu


# ----------------------------------------------------------------------------
# Model hyper-parameters (small, consistent with a waveform pipeline)
# ----------------------------------------------------------------------------
B = 2                # batch
T = 256              # samples
FF = 32              # denoiser frame size
H = 64               # denoiser hidden size
FE = 32              # separator encoder frame (== conv kernel/stride)
D = 64               # separator feature dim
K = 4                # chunk size (intra path length)
L = T // FE          # encoder frames            (= 8)
S = L // K           # number of chunks          (= 2)
SPKS = 2             # output sources
R = B * L            # fused frame rows          (= 16)
LANES = 128          # slab width


def _rnd8(n):
    return -(-n // 8) * 8


# ----------------------------------------------------------------------------
# Packed parameter slab layout: (name, (rows, cols)); every block starts at an
# 8-row boundary and is left-justified in the 128-lane slab.
# ----------------------------------------------------------------------------
_BLOCKS = (
    ("w1",     (FF, 2 * D)),            # [wd1 | w_enc]
    ("b1",     (1, 2 * D)),             # [bd1 | bd2@w_enc + b_enc]
    ("wd2e",   (H, D)),                 # wd2 @ w_enc
    ("a_kin",  (R, R)),                 # intra-chunk row-space mix (kron)
    ("wid",    (D, D)),
    ("bid",    (R, D)),                 # folded intra bias (per-row)
    ("a_sin",  (R, R)),                 # inter-chunk row-space mix (kron)
    ("wie",    (D, D)),
    ("bie",    (R, D)),                 # folded inter bias (per-row)
    ("wmask",  (D, SPKS * D)),
    ("bmask",  (1, SPKS * D)),
    ("wdec",   (SPKS * D, SPKS * FE)),  # block-diag decoder (both speakers)
    ("bdec",   (1, SPKS * FE)),
    ("lmaskL", (R, LANES)),             # output-layout 0/1 mask [R,T], left half
    ("lmaskR", (R, LANES)),             # right half
    ("rsel",   (B * SPKS, SPKS * R)),   # output row-gather matrix
)

_OFF = {}
_r = 0
for _name, (_h, _w) in _BLOCKS:
    _OFF[_name] = (_r, _h, _w)
    _r += _rnd8(_h)
SLAB_ROWS = _r                           # 544


# ----------------------------------------------------------------------------
# Fused kernel: denoiser -> encoder -> intra/inter mixing -> mask -> decoder
#               -> in-kernel layout to [B*SPKS, T]
# ----------------------------------------------------------------------------
def _fused_kernel(x_ref, w_ref, o_ref):
    f32 = jnp.float32

    def blk(name):
        r, h, w = _OFF[name]
        return w_ref[r:r + h, :w]

    def mm(a, b):
        return jnp.dot(a, b, preferred_element_type=f32)

    x = x_ref[...]                                            # [16, 32]

    # --- model_denoise (2-layer frame MLP + residual) fused with encoder ----
    # t[:, :64] = x@wd1 + bd1 ; t[:, 64:] = x@w_enc + (bd2@w_enc + b_enc)
    t = mm(x, blk("w1")) + blk("b1")                          # [16, 128]
    h = jnp.maximum(t[:, :H], 0.0)
    e = jnp.maximum(t[:, H:] + mm(h, blk("wd2e")), 0.0)       # [16, 64]

    # --- intra-chunk path: K-mix in row space, bias folded through wid -------
    seg = e + jnp.maximum(
        mm(mm(blk("a_kin"), e), blk("wid")) + blk("bid"), 0.0)

    # --- inter-chunk path: S-mix in row space --------------------------------
    feats = seg + jnp.maximum(
        mm(mm(blk("a_sin"), seg), blk("wie")) + blk("bie"), 0.0)   # [16, 64]

    # --- mask estimation + application (lane-dense 128) + decoder ------------
    mlog = mm(feats, blk("wmask")) + blk("bmask")             # [16, 128]
    masked = jax.nn.sigmoid(mlog) * jnp.concatenate([e, e], axis=-1)
    dec = mm(masked, blk("wdec")) + blk("bdec")               # [16,64] rows=(b,l) cols=(spk,f)

    # --- in-kernel layout: dec[(b,l),(spk,f)] -> out[(b,spk), l*FE+f] ---------
    lmask = jnp.concatenate([blk("lmaskL"), blk("lmaskR")], axis=-1)   # [16, 256]
    m0 = jnp.concatenate([dec[:, :FE]] * L, axis=-1) * lmask           # speaker 0
    m1 = jnp.concatenate([dec[:, FE:]] * L, axis=-1) * lmask           # speaker 1
    out = mm(blk("rsel"), jnp.concatenate([m0, m1], axis=0))           # [4, 256]
    o_ref[...] = out.astype(o_ref.dtype)


# ----------------------------------------------------------------------------
# Parameters
# ----------------------------------------------------------------------------
def init_params():
    key = jax.random.PRNGKey(42)
    ks = jax.random.split(key, 10)
    n = lambda k, s: (0.1 * jax.random.normal(k, s, dtype=jnp.float32))
    z = lambda s: jnp.zeros(s, dtype=jnp.float32)
    return dict(
        # model_denoise
        wd1=n(ks[0], (FF, H)), bd1=z((H,)),
        wd2=n(ks[1], (H, FF)), bd2=z((FF,)),
        # Dual_Path_RNN
        w_enc=n(ks[2], (FE, D)), b_enc=z((D,)),
        w_intra_k=n(ks[3], (K, K)), b_intra_k=z((K,)),
        w_intra_d=n(ks[4], (D, D)), b_intra_d=z((D,)),
        w_inter_s=n(ks[5], (S, S)), b_inter_s=z((S,)),
        w_inter_d=n(ks[6], (D, D)), b_inter_d=z((D,)),
        w_mask=n(ks[7], (D, SPKS * D)), b_mask=z((SPKS * D,)),
        w_dec=n(ks[8], (D, FE)), b_dec=z((FE,)),
    )


def prepare_params(raw):
    """Fold/pre-compute everything and pack it into one [SLAB_ROWS, 128] slab."""
    f32 = jnp.float32
    hi = jax.lax.Precision.HIGHEST
    dot = functools.partial(jnp.dot, precision=hi)
    row = lambda v: jnp.asarray(v, f32).reshape(1, -1)

    wd1, bd1 = jnp.asarray(raw["wd1"], f32), row(raw["bd1"])
    wd2, bd2 = jnp.asarray(raw["wd2"], f32), row(raw["bd2"])
    w_enc, b_enc = jnp.asarray(raw["w_enc"], f32), row(raw["b_enc"])

    # e = relu(x@w_enc + relu(x@wd1+bd1) @ (wd2@w_enc) + (bd2@w_enc + b_enc))
    w1 = jnp.concatenate([wd1, w_enc], axis=1)                      # [32, 128]
    b1 = jnp.concatenate([bd1, dot(bd2, w_enc) + b_enc], axis=1)    # [1, 128]
    wd2e = dot(wd2, w_enc)                                          # [64, 64]

    # intra mix: mixed[g*K+k,:] = sum_j wk[j,k]*e[g*K+j,:] (+bk[k] folded below)
    a_kin = jnp.kron(jnp.eye(B * S, dtype=f32), jnp.asarray(raw["w_intra_k"], f32).T)
    b_k_rows = jnp.tile(jnp.asarray(raw["b_intra_k"], f32), B * S).reshape(-1, 1)
    wid = jnp.asarray(raw["w_intra_d"], f32)
    bid = dot(b_k_rows, jnp.sum(wid, axis=0, keepdims=True)) + row(raw["b_intra_d"])

    # inter mix
    a_sin = jnp.kron(jnp.eye(B, dtype=f32),
                     jnp.kron(jnp.asarray(raw["w_inter_s"], f32).T, jnp.eye(K, dtype=f32)))
    b_s_rows = jnp.tile(jnp.repeat(jnp.asarray(raw["b_inter_s"], f32), K), B).reshape(-1, 1)
    wie = jnp.asarray(raw["w_inter_d"], f32)
    bie = dot(b_s_rows, jnp.sum(wie, axis=0, keepdims=True)) + row(raw["b_inter_d"])

    wmask, bmask = jnp.asarray(raw["w_mask"], f32), row(raw["b_mask"])

    # decode both speakers in one block-diagonal matmul
    wdec = jnp.kron(jnp.eye(SPKS, dtype=f32), jnp.asarray(raw["w_dec"], f32))
    bdec = jnp.tile(jnp.asarray(raw["b_dec"], f32), SPKS).reshape(1, -1)

    # output-layout helpers: out[(b,s), l*FE+f] = dec[(b,l), s*FE+f]
    lmask = (jnp.arange(R)[:, None] % L == jnp.arange(T)[None, :] // FE).astype(f32)
    rsel = jnp.zeros((B * SPKS, SPKS * R), f32)
    for b in range(B):
        for s in range(SPKS):
            rsel = rsel.at[b * SPKS + s, s * R + b * L: s * R + (b + 1) * L].set(1.0)

    vals = dict(w1=w1, b1=b1, wd2e=wd2e, a_kin=a_kin, wid=wid, bid=bid,
                a_sin=a_sin, wie=wie, bie=bie, wmask=wmask, bmask=bmask,
                wdec=wdec, bdec=bdec, lmaskL=lmask[:, :LANES],
                lmaskR=lmask[:, LANES:], rsel=rsel)

    slab = jnp.zeros((SLAB_ROWS, LANES), f32)
    for name, (r, h, w) in _OFF.items():
        slab = slab.at[r:r + h, :w].set(vals[name])
    return slab


# ----------------------------------------------------------------------------
# Forward pass:  x -> model_denoise(x) -> Dual_Path_RNN(x)   (one pallas_call)
# ----------------------------------------------------------------------------
def combined_forward(slab, x):
    x_frames = x.reshape(R, FF)                                 # [16, 32]

    flops = 2 * (R * FF * 2 * D + R * H * D + 2 * (R * R * D + R * D * D)
                 + R * D * SPKS * D + R * SPKS * D * SPKS * FE
                 + B * SPKS * SPKS * R * T)
    cost = pl.CostEstimate(
        flops=flops, transcendentals=R * SPKS * D,
        bytes_accessed=(SLAB_ROWS * LANES + R * FF + B * SPKS * T) * 4)

    out4 = pl.pallas_call(
        _fused_kernel,
        grid=(1,),
        in_specs=[pl.BlockSpec((R, FF), lambda i: (0, 0)),
                  pl.BlockSpec((SLAB_ROWS, LANES), lambda i: (0, 0))],
        out_specs=pl.BlockSpec((B * SPKS, T), lambda i: (0, 0)),
        out_shape=jax.ShapeDtypeStruct((B * SPKS, T), jnp.float32),
        compiler_params=pltpu.CompilerParams(dimension_semantics=("arbitrary",)),
        cost_estimate=cost,
    )(x_frames, slab)                                           # [4, 256], rows = (b, spk)

    return out4.reshape(B, SPKS, T)                             # free reshape, no transpose


# ----------------------------------------------------------------------------
# Pure-JAX reference (original, unfolded math) for correctness checking
# ----------------------------------------------------------------------------
def reference_forward(raw, x):
    hi = jax.lax.Precision.HIGHEST
    dot = functools.partial(jnp.dot, precision=hi)
    xf = x.reshape(R, FF)
    h = jnp.maximum(dot(xf, raw["wd1"]) + raw["bd1"], 0.0)
    x_dn = xf + dot(h, raw["wd2"]) + raw["bd2"]
    e = jnp.maximum(dot(x_dn, raw["w_enc"]) + raw["b_enc"], 0.0)

    e4 = e.reshape(B, S, K, D)
    mixed = (jnp.einsum("bsjd,jk->bskd", e4, raw["w_intra_k"], precision=hi)
             + raw["b_intra_k"][None, None, :, None])
    proj = jnp.maximum(jnp.einsum("bskd,de->bske", mixed, raw["w_intra_d"],
                                  precision=hi) + raw["b_intra_d"], 0.0)
    seg = e4 + proj
    mixed2 = (jnp.einsum("bikd,is->bskd", seg, raw["w_inter_s"], precision=hi)
              + raw["b_inter_s"][None, :, None, None])
    proj2 = jnp.maximum(jnp.einsum("bskd,de->bske", mixed2, raw["w_inter_d"],
                                   precision=hi) + raw["b_inter_d"], 0.0)
    feats = (seg + proj2).reshape(R, D)

    mlog = dot(feats, raw["w_mask"]) + raw["b_mask"]
    masked = jax.nn.sigmoid(mlog) * jnp.concatenate([e, e], axis=-1)
    dec0 = dot(masked[:, :D], raw["w_dec"]) + raw["b_dec"]
    dec1 = dot(masked[:, D:], raw["w_dec"]) + raw["b_dec"]
    dec = jnp.concatenate([dec0, dec1], axis=-1)                # [16, 64]
    return dec.reshape(B, L, SPKS, FE).transpose(0, 2, 1, 3).reshape(B, SPKS, T)


if __name__ == "__main__":
    raw = init_params()
    slab = prepare_params(raw)
    x = jax.random.normal(jax.random.PRNGKey(0), (B, T), dtype=jnp.float32)

    fwd = jax.jit(combined_forward)
    y = jax.block_until_ready(fwd(slab, x))
    assert y.shape == (B, SPKS, T) and y.dtype == jnp.float32

    y_ref = reference_forward(raw, x)
    assert jnp.allclose(y, y_ref, atol=1e-3, rtol=1e-3), (
        "max abs diff = %f" % float(jnp.max(jnp.abs(y - y_ref))))
    print("KERNEL_OK")
</pallas_src>

<mosaic_0001>
module attributes {stable_mosaic.version = 11 : i64} {
  func.func @_fused_kernel(%arg0: i32, %arg1: memref<16x32xf32, #tpu.memory_space<vmem>>, %arg2: memref<544x128xf32, #tpu.memory_space<vmem>>, %arg3: memref<4x256xf32, #tpu.memory_space<vmem>>) attributes {dimension_semantics = [#tpu.dimension_semantics<arbitrary>], iteration_bounds = array<i64: 1>, scalar_prefetch = 0 : i64, scratch_operands = 0 : i64, tpu.core_type = #tpu.core_type<tc>, window_params = [{pipeline_mode = #tpu.pipeline_mode<synchronous>, transform_indices = @transform_0, window_bounds = array<i64: 16, 32>}, {pipeline_mode = #tpu.pipeline_mode<synchronous>, transform_indices = @transform_1, window_bounds = array<i64: 544, 128>}, {pipeline_mode = #tpu.pipeline_mode<synchronous>, transform_indices = @transform_2, window_bounds = array<i64: 4, 256>}]} {
    %c0 = arith.constant 0 : index
    %c0_0 = arith.constant 0 : index
    %0 = vector.load %arg1[%c0, %c0_0] : memref<16x32xf32, #tpu.memory_space<vmem>>, vector<16x32xf32>
    %c0_1 = arith.constant 0 : index
    %c0_2 = arith.constant 0 : index
    %1 = vector.load %arg2[%c0_1, %c0_2] : memref<544x128xf32, #tpu.memory_space<vmem>>, vector<32x128xf32>
    %cst = arith.constant dense<0.000000e+00> : vector<16x128xf32>
    %2 = tpu.matmul %0, %1, %cst {dimension_numbers = #tpu.dot_dimension_numbers<[1], [0], [0], [1], [0, 0, 1, 1], [], []>} : vector<16x32xf32>, vector<32x128xf32>, vector<16x128xf32> -> vector<16x128xf32>
    %c32 = arith.constant 32 : index
    %c0_3 = arith.constant 0 : index
    %3 = vector.load %arg2[%c32, %c0_3] : memref<544x128xf32, #tpu.memory_space<vmem>>, vector<1x128xf32>
    %4 = vector.broadcast %3 : vector<1x128xf32> to vector<16x128xf32>
    %5 = arith.addf %2, %4 : vector<16x128xf32>
    %6 = vector.extract_strided_slice %5 {offsets = [0, 0], sizes = [16, 64], strides = [1, 1]} : vector<16x128xf32> to vector<16x64xf32>
    %cst_4 = arith.constant 0.000000e+00 : f32
    %7 = vector.broadcast %cst_4 : f32 to vector<16x64xf32>
    %8 = arith.maximumf %6, %7 : vector<16x64xf32>
    %9 = vector.extract_strided_slice %5 {offsets = [0, 64], sizes = [16, 64], strides = [1, 1]} : vector<16x128xf32> to vector<16x64xf32>
    %c40 = arith.constant 40 : index
    %c0_5 = arith.constant 0 : index
    %10 = vector.load %arg2[%c40, %c0_5] : memref<544x128xf32, #tpu.memory_space<vmem>>, vector<64x64xf32>
    %cst_6 = arith.constant dense<0.000000e+00> : vector<16x64xf32>
    %11 = tpu.matmul %8, %10, %cst_6 {dimension_numbers = #tpu.dot_dimension_numbers<[1], [0], [0], [1], [0, 0, 1, 1], [], []>} : vector<16x64xf32>, vector<64x64xf32>, vector<16x64xf32> -> vector<16x64xf32>
    %12 = arith.addf %9, %11 : vector<16x64xf32>
    %cst_7 = arith.constant 0.000000e+00 : f32
    %13 = vector.broadcast %cst_7 : f32 to vector<16x64xf32>
    %14 = arith.maximumf %12, %13 : vector<16x64xf32>
    %c104 = arith.constant 104 : index
    %c0_8 = arith.constant 0 : index
    %15 = vector.load %arg2[%c104, %c0_8] : memref<544x128xf32, #tpu.memory_space<vmem>>, vector<16x16xf32>
    %cst_9 = arith.constant dense<0.000000e+00> : vector<16x64xf32>
    %16 = tpu.matmul %15, %14, %cst_9 {dimension_numbers = #tpu.dot_dimension_numbers<[1], [0], [0], [1], [0, 0, 1, 1], [], []>} : vector<16x16xf32>, vector<16x64xf32>, vector<16x64xf32> -> vector<16x64xf32>
    %c120 = arith.constant 120 : index
    %c0_10 = arith.constant 0 : index
    %17 = vector.load %arg2[%c120, %c0_10] : memref<544x128xf32, #tpu.memory_space<vmem>>, vector<64x64xf32>
    %cst_11 = arith.constant dense<0.000000e+00> : vector<16x64xf32>
    %18 = tpu.matmul %16, %17, %cst_11 {dimension_numbers = #tpu.dot_dimension_numbers<[1], [0], [0], [1], [0, 0, 1, 1], [], []>} : vector<16x64xf32>, vector<64x64xf32>, vector<16x64xf32> -> vector<16x64xf32>
    %c184 = arith.constant 184 : index
    %c0_12 = arith.constant 0 : index
    %19 = vector.load %arg2[%c184, %c0_12] : memref<544x128xf32, #tpu.memory_space<vmem>>, vector<16x64xf32>
    %20 = arith.addf %18, %19 : vector<16x64xf32>
    %cst_13 = arith.constant 0.000000e+00 : f32
    %21 = vector.broadcast %cst_13 : f32 to vector<16x64xf32>
    %22 = arith.maximumf %20, %21 : vector<16x64xf32>
    %23 = arith.addf %14, %22 : vector<16x64xf32>
    %c200 = arith.constant 200 : index
    %c0_14 = arith.constant 0 : index
    %24 = vector.load %arg2[%c200, %c0_14] : memref<544x128xf32, #tpu.memory_space<vmem>>, vector<16x16xf32>
    %cst_15 = arith.constant dense<0.000000e+00> : vector<16x64xf32>
    %25 = tpu.matmul %24, %23, %cst_15 {dimension_numbers = #tpu.dot_dimension_numbers<[1], [0], [0], [1], [0, 0, 1, 1], [], []>} : vector<16x16xf32>, vector<16x64xf32>, vector<16x64xf32> -> vector<16x64xf32>
    %c216 = arith.constant 216 : index
    %c0_16 = arith.constant 0 : index
    %26 = vector.load %arg2[%c216, %c0_16] : memref<544x128xf32, #tpu.memory_space<vmem>>, vector<64x64xf32>
    %cst_17 = arith.constant dense<0.000000e+00> : vector<16x64xf32>
    %27 = tpu.matmul %25, %26, %cst_17 {dimension_numbers = #tpu.dot_dimension_numbers<[1], [0], [0], [1], [0, 0, 1, 1], [], []>} : vector<16x64xf32>, vector<64x64xf32>, vector<16x64xf32> -> vector<16x64xf32>
    %c280 = arith.constant 280 : index
    %c0_18 = arith.constant 0 : index
    %28 = vector.load %arg2[%c280, %c0_18] : memref<544x128xf32, #tpu.memory_space<vmem>>, vector<16x64xf32>
    %29 = arith.addf %27, %28 : vector<16x64xf32>
    %cst_19 = arith.constant 0.000000e+00 : f32
    %30 = vector.broadcast %cst_19 : f32 to vector<16x64xf32>
    %31 = arith.maximumf %29, %30 : vector<16x64xf32>
    %32 = arith.addf %23, %31 : vector<16x64xf32>
    %c296 = arith.constant 296 : index
    %c0_20 = arith.constant 0 : index
    %33 = vector.load %arg2[%c296, %c0_20] : memref<544x128xf32, #tpu.memory_space<vmem>>, vector<64x128xf32>
    %cst_21 = arith.constant dense<0.000000e+00> : vector<16x128xf32>
    %34 = tpu.matmul %32, %33, %cst_21 {dimension_numbers = #tpu.dot_dimension_numbers<[1], [0], [0], [1], [0, 0, 1, 1], [], []>} : vector<16x64xf32>, vector<64x128xf32>, vector<16x128xf32> -> vector<16x128xf32>
    %c360 = arith.constant 360 : index
    %c0_22 = arith.constant 0 : index
    %35 = vector.load %arg2[%c360, %c0_22] : memref<544x128xf32, #tpu.memory_space<vmem>>, vector<1x128xf32>
    %36 = vector.broadcast %35 : vector<1x128xf32> to vector<16x128xf32>
    %37 = arith.addf %34, %36 : vector<16x128xf32>
    %38 = arith.negf %37 : vector<16x128xf32>
    %39 = math.exp %38 : vector<16x128xf32>
    %cst_23 = arith.constant 1.000000e+00 : f32
    %40 = vector.broadcast %cst_23 : f32 to vector<16x128xf32>
    %41 = arith.addf %40, %39 : vector<16x128xf32>
    %42 = arith.divf %40, %41 : vector<16x128xf32>
    %43 = tpu.concatenate %14, %14 in 1 : vector<16x64xf32>, vector<16x64xf32> -> vector<16x128xf32>
    %44 = arith.mulf %42, %43 : vector<16x128xf32>
    %c368 = arith.constant 368 : index
    %c0_24 = arith.constant 0 : index
    %45 = vector.load %arg2[%c368, %c0_24] : memref<544x128xf32, #tpu.memory_space<vmem>>, vector<128x64xf32>
    %cst_25 = arith.constant dense<0.000000e+00> : vector<16x64xf32>
    %46 = tpu.matmul %44, %45, %cst_25 {dimension_numbers = #tpu.dot_dimension_numbers<[1], [0], [0], [1], [0, 0, 1, 1], [], []>} : vector<16x128xf32>, vector<128x64xf32>, vector<16x64xf32> -> vector<16x64xf32>
    %c496 = arith.constant 496 : index
    %c0_26 = arith.constant 0 : index
    %47 = vector.load %arg2[%c496, %c0_26] : memref<544x128xf32, #tpu.memory_space<vmem>>, vector<1x64xf32>
    %48 = vector.broadcast %47 : vector<1x64xf32> to vector<16x64xf32>
    %49 = arith.addf %46, %48 : vector<16x64xf32>
    %c504 = arith.constant 504 : index
    %c0_27 = arith.constant 0 : index
    %50 = vector.load %arg2[%c504, %c0_27] : memref<544x128xf32, #tpu.memory_space<vmem>>, vector<16x128xf32>
    %c520 = arith.constant 520 : index
    %c0_28 = arith.constant 0 : index
    %51 = vector.load %arg2[%c520, %c0_28] : memref<544x128xf32, #tpu.memory_space<vmem>>, vector<16x128xf32>
    %52 = tpu.concatenate %50, %51 in 1 : vector<16x128xf32>, vector<16x128xf32> -> vector<16x256xf32>
    %53 = vector.extract_strided_slice %49 {offsets = [0, 0], sizes = [16, 32], strides = [1, 1]} : vector<16x64xf32> to vector<16x32xf32>
    %54 = tpu.concatenate %53, %53, %53, %53, %53, %53, %53, %53 in 1 : vector<16x32xf32>, vector<16x32xf32>, vector<16x32xf32>, vector<16x32xf32>, vector<16x32xf32>, vector<16x32xf32>, vector<16x32xf32>, vector<16x32xf32> -> vector<16x256xf32>
    %55 = arith.mulf %54, %52 : vector<16x256xf32>
    %56 = vector.extract_strided_slice %49 {offsets = [0, 32], sizes = [16, 32], strides = [1, 1]} : vector<16x64xf32> to vector<16x32xf32>
    %57 = tpu.concatenate %56, %56, %56, %56, %56, %56, %56, %56 in 1 : vector<16x32xf32>, vector<16x32xf32>, vector<16x32xf32>, vector<16x32xf32>, vector<16x32xf32>, vector<16x32xf32>, vector<16x32xf32>, vector<16x32xf32> -> vector<16x256xf32>
    %58 = arith.mulf %57, %52 : vector<16x256xf32>
    %c536 = arith.constant 536 : index
    %c0_29 = arith.constant 0 : index
    %59 = vector.load %arg2[%c536, %c0_29] : memref<544x128xf32, #tpu.memory_space<vmem>>, vector<4x32xf32>
    %60 = tpu.concatenate %55, %58 in 0 : vector<16x256xf32>, vector<16x256xf32> -> vector<32x256xf32>
    %cst_30 = arith.constant dense<0.000000e+00> : vector<4x256xf32>
    %61 = tpu.matmul %59, %60, %cst_30 {dimension_numbers = #tpu.dot_dimension_numbers<[1], [0], [0], [1], [0, 0, 1, 1], [], []>} : vector<4x32xf32>, vector<32x256xf32>, vector<4x256xf32> -> vector<4x256xf32>
    %c0_31 = arith.constant 0 : index
    %c0_32 = arith.constant 0 : index
    %62 = vector.load %arg3[%c0_31, %c0_32] : memref<4x256xf32, #tpu.memory_space<vmem>>, vector<4x256xf32>
    tpu.vector_store %arg3[%c0_31, %c0_32], %61 {strides = array<i32>} : memref<4x256xf32, #tpu.memory_space<vmem>>, vector<4x256xf32>,
    return
  }
  func.func @transform_0(%arg0: i32) -> (i32, i32) {
    %c0_i32 = arith.constant 0 : i32
    %c0_i32_0 = arith.constant 0 : i32
    %c0_i32_1 = arith.constant 0 : i32
    return %c0_i32, %c0_i32_0 : i32, i32
  }
  func.func @transform_1(%arg0: i32) -> (i32, i32) {
    %c0_i32 = arith.constant 0 : i32
    %c0_i32_0 = arith.constant 0 : i32
    %c0_i32_1 = arith.constant 0 : i32
    return %c0_i32, %c0_i32_0 : i32, i32
  }
  func.func @transform_2(%arg0: i32) -> (i32, i32) {
    %c0_i32 = arith.constant 0 : i32
    %c0_i32_0 = arith.constant 0 : i32
    %c0_i32_1 = arith.constant 0 : i32
    return %c0_i32, %c0_i32_0 : i32, i32
  }
}

</mosaic_0001>

<llo_original>
// kernel: combined_forward.1
$region0: #{combined_forward.1}
  #allocation0 [shape = 'u32[]', space=smem, size = 0x4, offset = 0x4, fixed_abs, tag = 'smem constant byte address 0x4 - core index']
  #allocation1 [shape = 'u32[144,128]{1,0:T(1,128)}', space=vmem, size = 0x12000, scoped, tag = 'internal scratch']
  %s0 = inlined_call_operand.vmem [shape: f32[16,32], index: 0, kind: input, shape index: {}]
  %s1 = inlined_call_operand.hbm [shape: f32[544,128], index: 1, kind: input, shape index: {}]
  %s2 = inlined_call_operand.vmem [shape: f32[4,256], index: 2, kind: output, shape index: {}]
  %s3 = sld [smem:[#allocation0]]
  $region22: #{combined_forward.1} parent=0
    _
  %s5 = ssub.s32 1, %s3
  %s6 = scalar_select 0, %s5, %s3
  $region1: #{combined_forward.1} parent=0
    #allocation2 [shape = 'u8[278528]{0}', space=vmem, size = 0x44000, scoped, tag = 'input window, operand 1, single buffered']
    #allocation3 [shape = 's32[1]{0}', space=sflag, size = 0x4, scoped, tag = 'scoped memory for combined_forward.1']
    %7 = vsyncpa [#allocation3], 0
    // Predicated region
    $region2: #{combined_forward.1} parent=1 // pred_check
      _
    $region3: #{combined_forward.1} parent=1 // pred_check_branch
      %9 = sbr.rel (0) target = $region5
    $region4: #{combined_forward.1} parent=1 // pred_region
      _
    $region5: #{combined_forward.1} parent=1 // pred_fallthru
      _
    // Predicated region
    $region6: #{combined_forward.1} parent=1 // pred_check
      _
    $region7: #{combined_forward.1} parent=1 // pred_check_branch
      %11 = sbr.rel (0) target = $region9
    $region8: #{combined_forward.1} parent=1 // pred_region
      %s13 = ssub.s32 8704, 8704
      %14 = vsyncadd [#allocation3], %s13
      %s15 = sshll.u32 [#allocation2], 4
      %s16 = int_to_ptr.vmem [resolvable:$true] %s15
      %21 = dma.hbm_to_vmem [thread:$0]  %s1, 8704, %s16, [#allocation3], 128, 128, 8
    $region9: #{combined_forward.1} parent=1 // pred_fallthru
      _
    // Predicated region
    $region10: #{combined_forward.1} parent=1 // pred_check
      _
    $region11: #{combined_forward.1} parent=1 // pred_check_branch
      %23 = sbr.rel (0) target = $region13
    $region12: #{combined_forward.1} parent=1 // pred_region
      %24 = dma.done [#allocation3], 8704
    $region13: #{combined_forward.1} parent=1 // pred_fallthru
      _
    %v25 = vld [vmem:[%s0] sm:$0xff]
    %v26 = vld [vmem:[%s0 + $0x8] sm:$0xff]
    %v27 = vld [vmem:[#allocation2] sm:$0xff]
    %v28 = vld [vmem:[#allocation2 + $0x8] sm:$0xff]
    %v29 = vld [vmem:[#allocation2 + $0x10] sm:$0xff]
    %v30 = vld [vmem:[#allocation2 + $0x18] sm:$0xff]
    %v31 = vld [vmem:[#allocation2 + $0x20] sm:$0x1]
    %v32 = vlaneseq
    %v33 = vshrl.u32 %v32, 7
    %v34 = vsub.s32 0, %v33
    %v35 = vrot.slane %v31, %v34
    %vm36 = vcmask 261120
    %v38 = vsel %vm36, %v25, 0
    %v41 = vsel %vm36, %v26, 0
    %43 = vmatprep.subr.mxu0 0.0
    %44 = vmatpush1.msra.mxu0 0.0
    %45 = vmatprep.subr.mxu0 0.0
    %46 = vmatpush1.msra.mxu0 0.0
    %47 = vmatprep.subr.mxu0 0.0
    %48 = vmatpush1.msra.mxu0 0.0
    %49 = vmatprep.subr.mxu0 0.0
    %50 = vmatpush1.msra.mxu0 0.0
    %51 = vmatprep.subr.mxu0 0.0
    %52 = vmatpush1.msra.mxu0 0.0
    %53 = vmatprep.subr.mxu0 0.0
    %54 = vmatpush1.msra.mxu0 0.0
    %55 = vmatprep.subr.mxu0 0.0
    %56 = vmatpush1.msra.mxu0 0.0
    %57 = vmatprep.subr.mxu0 0.0
    %58 = vmatpush1.msra.mxu0 0.0
    %59 = vmatprep.subr.mxu0 0.0
    %60 = vmatpush1.msra.mxu0 0.0
    %61 = vmatprep.subr.mxu0 0.0
    %62 = vmatpush1.msra.mxu0 0.0
    %63 = vmatprep.subr.mxu0 0.0
    %64 = vmatpush1.msra.mxu0 0.0
    %65 = vmatprep.subr.mxu0 0.0
    %66 = vmatpush1.msra.mxu0 0.0
    %67 = vmatprep.subr.mxu0 0.0
    %68 = vmatpush1.msra.mxu0 %v30
    %69 = vmatprep.subr.mxu0 0.0
    %70 = vmatpush1.msra.mxu0 %v29
    %71 = vmatprep.subr.mxu0 0.0
    %72 = vmatpush1.msra.mxu0 %v28
    %73 = vmatprep.subr.mxu0 0.0
    %74 = vmatpush1.msra.mxu0 %v27
    %75 = vmatprep.subr.mxu0 0.0
    %76 = vmatpush2.msra.mxu0 0.0
    %77 = vmatprep.subr.mxu0 0.0
    %78 = vmatpush2.msra.mxu0 0.0
    %79 = vmatprep.subr.mxu0 0.0
    %80 = vmatpush2.msra.mxu0 0.0
    %81 = vmatprep.subr.mxu0 0.0
    %82 = vmatpush2.msra.mxu0 0.0
    %83 = vmatprep.subr.mxu0 0.0
    %84 = vmatpush2.msra.mxu0 0.0
    %85 = vmatprep.subr.mxu0 0.0
    %86 = vmatpush2.msra.mxu0 0.0
    %87 = vmatprep.subr.mxu0 0.0
    %88 = vmatpush2.msra.mxu0 0.0
    %89 = vmatprep.subr.mxu0 0.0
    %90 = vmatpush2.msra.mxu0 0.0
    %91 = vmatprep.subr.mxu0 0.0
    %92 = vmatpush2.msra.mxu0 0.0
    %93 = vmatprep.subr.mxu0 0.0
    %94 = vmatpush2.msra.mxu0 0.0
    %95 = vmatprep.subr.mxu0 0.0
    %96 = vmatpush2.msra.mxu0 0.0
    %97 = vmatprep.subr.mxu0 0.0
    %98 = vmatpush2.msra.mxu0 0.0
    %99 = vmatprep.subr.mxu0 0.0
    %100 = vmatpush2.msra.mxu0 0.0
    %101 = vmatprep.subr.mxu0 0.0
    %102 = vmatpush2.msra.mxu0 0.0
    %103 = vmatprep.subr.mxu0 0.0
    %104 = vmatpush2.msra.mxu0 0.0
    %105 = vmatprep.subr.mxu0 0.0
    %106 = vmatpush2.msra.mxu0 0.0
    %107 = vmatprep.mubr.f32.mxu0 0.0
    %108 = vmatmul.mubr.f32.gmra.mxu0 %v38
    %v109 = vpop.f32.mrf.mxu0
    %v110 = vadd.f32 %v35, %v109
    %v111 = vpop.f32.mrf.mxu0
    %112 = vmatprep.mubr.f32.mxu0 0.0
    %113 = vmatmul.mubr.f32.gmra.mxu0 %v41
    %v114 = vpop.f32.mrf.mxu0
    %v115 = vadd.f32 %v35, %v114
    %v116 = vpop.f32.mrf.mxu0
    %117 = vdwg.mxu0
    %v118 = vmax.f32 %v110, 0.0
    %v119 = vmax.f32 %v115, 0.0
    %v120 = vld [vmem:[#allocation2 + $0x28] sm:$0xff]
    %v121 = vld [vmem:[#allocation2 + $0x30] sm:$0xff]
    %v122 = vld [vmem:[#allocation2 + $0x38] sm:$0xff]
    %v123 = vld [vmem:[#allocation2 + $0x40] sm:$0xff]
    %v124 = vld [vmem:[#allocation2 + $0x48] sm:$0xff]
    %v125 = vld [vmem:[#allocation2 + $0x50] sm:$0xff]
    %v126 = vld [vmem:[#allocation2 + $0x58] sm:$0xff]
    %v127 = vld [vmem:[#allocation2 + $0x60] sm:$0xff]
    %vm128 = vcmask 523264
    %v130 = vsel %vm128, %v118, 0
    %v133 = vsel %vm128, %v119, 0
    %135 = vmatprep.subr.mxu0 0.0
    %136 = vmatpush1.msra.mxu0 0.0
    %137 = vmatprep.subr.mxu0 0.0
    %138 = vmatpush1.msra.mxu0 0.0
    %139 = vmatprep.subr.mxu0 0.0
    %140 = vmatpush1.msra.mxu0 0.0
    %141 = vmatprep.subr.mxu0 0.0
    %142 = vmatpush1.msra.mxu0 0.0
    %143 = vmatprep.subr.mxu0 0.0
    %144 = vmatpush1.msra.mxu0 0.0
    %145 = vmatprep.subr.mxu0 0.0
    %146 = vmatpush1.msra.mxu0 0.0
    %147 = vmatprep.subr.mxu0 0.0
    %148 = vmatpush1.msra.mxu0 0.0
    %149 = vmatprep.subr.mxu0 0.0
    %150 = vmatpush1.msra.mxu0 0.0
    %151 = vmatprep.subr.mxu0 0.0
    %152 = vmatpush1.msra.mxu0 %v127
    %153 = vmatprep.subr.mxu0 0.0
    %154 = vmatpush1.msra.mxu0 %v126
    %155 = vmatprep.subr.mxu0 0.0
    %156 = vmatpush1.msra.mxu0 %v125
    %157 = vmatprep.subr.mxu0 0.0
    %158 = vmatpush1.msra.mxu0 %v124
    %159 = vmatprep.subr.mxu0 0.0
    %160 = vmatpush1.msra.mxu0 %v123
    %161 = vmatprep.subr.mxu0 0.0
    %162 = vmatpush1.msra.mxu0 %v122
    %163 = vmatprep.subr.mxu0 0.0
    %164 = vmatpush1.msra.mxu0 %v121
    %165 = vmatprep.subr.mxu0 0.0
    %166 = vmatpush1.msra.mxu0 %v120
    %167 = vmatprep.subr.mxu0 0.0
    %168 = vmatpush2.msra.mxu0 0.0
    %169 = vmatprep.subr.mxu0 0.0
    %170 = vmatpush2.msra.mxu0 0.0
    %171 = vmatprep.subr.mxu0 0.0
    %172 = vmatpush2.msra.mxu0 0.0
    %173 = vmatprep.subr.mxu0 0.0
    %174 = vmatpush2.msra.mxu0 0.0
    %175 = vmatprep.subr.mxu0 0.0
    %176 = vmatpush2.msra.mxu0 0.0
    %177 = vmatprep.subr.mxu0 0.0
    %178 = vmatpush2.msra.mxu0 0.0
    %179 = vmatprep.subr.mxu0 0.0
    %180 = vmatpush2.msra.mxu0 0.0
    %181 = vmatprep.subr.mxu0 0.0
    %182 = vmatpush2.msra.mxu0 0.0
    %183 = vmatprep.subr.mxu0 0.0
    %184 = vmatpush2.msra.mxu0 0.0
    %185 = vmatprep.subr.mxu0 0.0
    %186 = vmatpush2.msra.mxu0 0.0
    %187 = vmatprep.subr.mxu0 0.0
    %188 = vmatpush2.msra.mxu0 0.0
    %189 = vmatprep.subr.mxu0 0.0
    %190 = vmatpush2.msra.mxu0 0.0
    %191 = vmatprep.subr.mxu0 0.0
    %192 = vmatpush2.msra.mxu0 0.0
    %193 = vmatprep.subr.mxu0 0.0
    %194 = vmatpush2.msra.mxu0 0.0
    %195 = vmatprep.subr.mxu0 0.0
    %196 = vmatpush2.msra.mxu0 0.0
    %197 = vmatprep.subr.mxu0 0.0
    %198 = vmatpush2.msra.mxu0 0.0
    %199 = vmatprep.mubr.f32.mxu0 0.0
    %200 = vmatmul.mubr.f32.gmra.mxu0 %v130
    %v201 = vpop.f32.mrf.mxu0
    %v202 = vadd.f32 0.0, %v201
    %v203 = vpop.f32.mrf.mxu0
    %204 = vmatprep.mubr.f32.mxu0 0.0
    %205 = vmatmul.mubr.f32.gmra.mxu0 %v133
    %v206 = vpop.f32.mrf.mxu0
    %v207 = vadd.f32 0.0, %v206
    %v208 = vpop.f32.mrf.mxu0
    %209 = vdwg.mxu0
    %212 = vrot.lane.b32.xlu0 %v202, 64
    %v213 = vpop.permute.xlu0 %212
    %214 = vrot.lane.b32.xlu0 %v207, 64
    %v215 = vpop.permute.xlu0 %214
    %v218 = vadd.f32 %v110, %v213
    %v219 = vadd.f32 %v115, %v215
    %v220 = vmax.f32 %v218, 0.0
    %v221 = vmax.f32 %v219, 0.0
    %v222 = vld [vmem:[#allocation2 + $0x68] sm:$0xff]
    %v223 = vld [vmem:[#allocation2 + $0x70] sm:$0xff]
    %226 = vrot.lane.b32.xlu0 %v220, 64
    %v227 = vpop.permute.xlu0 %226
    %228 = vrot.lane.b32.xlu0 %v221, 64
    %v229 = vpop.permute.xlu0 %228
    %vm232 = vcmask 130048
    %v234 = vsel %vm232, %v222, 0
    %v237 = vsel %vm232, %v223, 0
    %239 = vmatprep.subr.mxu0 0.0
    %240 = vmatpush1.msra.mxu0 0.0
    %241 = vmatprep.subr.mxu0 0.0
    %242 = vmatpush1.msra.mxu0 0.0
    %243 = vmatprep.subr.mxu0 0.0
    %244 = vmatpush1.msra.mxu0 0.0
    %245 = vmatprep.subr.mxu0 0.0
    %246 = vmatpush1.msra.mxu0 0.0
    %247 = vmatprep.subr.mxu0 0.0
    %248 = vmatpush1.msra.mxu0 0.0
    %249 = vmatprep.subr.mxu0 0.0
    %250 = vmatpush1.msra.mxu0 0.0
    %251 = vmatprep.subr.mxu0 0.0
    %252 = vmatpush1.msra.mxu0 0.0
    %253 = vmatprep.subr.mxu0 0.0
    %254 = vmatpush1.msra.mxu0 0.0
    %255 = vmatprep.subr.mxu0 0.0
    %256 = vmatpush1.msra.mxu0 0.0
    %257 = vmatprep.subr.mxu0 0.0
    %258 = vmatpush1.msra.mxu0 0.0
    %259 = vmatprep.subr.mxu0 0.0
    %260 = vmatpush1.msra.mxu0 0.0
    %261 = vmatprep.subr.mxu0 0.0
    %262 = vmatpush1.msra.mxu0 0.0
    %263 = vmatprep.subr.mxu0 0.0
    %264 = vmatpush1.msra.mxu0 0.0
    %265 = vmatprep.subr.mxu0 0.0
    %266 = vmatpush1.msra.mxu0 0.0
    %267 = vmatprep.subr.mxu0 0.0
    %268 = vmatpush1.msra.mxu0 %v229
    %269 = vmatprep.subr.mxu0 0.0
    %270 = vmatpush1.msra.mxu0 %v227
    %271 = vmatprep.subr.mxu0 0.0
    %272 = vmatpush2.msra.mxu0 0.0
    %273 = vmatprep.subr.mxu0 0.0
    %274 = vmatpush2.msra.mxu0 0.0
    %275 = vmatprep.subr.mxu0 0.0
    %276 = vmatpush2.msra.mxu0 0.0
    %277 = vmatprep.subr.mxu0 0.0
    %278 = vmatpush2.msra.mxu0 0.0
    %279 = vmatprep.subr.mxu0 0.0
    %280 = vmatpush2.msra.mxu0 0.0
    %281 = vmatprep.subr.mxu0 0.0
    %282 = vmatpush2.msra.mxu0 0.0
    %283 = vmatprep.subr.mxu0 0.0
    %284 = vmatpush2.msra.mxu0 0.0
    %285 = vmatprep.subr.mxu0 0.0
    %286 = vmatpush2.msra.mxu0 0.0
    %287 = vmatprep.subr.mxu0 0.0
    %288 = vmatpush2.msra.mxu0 0.0
    %289 = vmatprep.subr.mxu0 0.0
    %290 = vmatpush2.msra.mxu0 0.0
    %291 = vmatprep.subr.mxu0 0.0
    %292 = vmatpush2.msra.mxu0 0.0
    %293 = vmatprep.subr.mxu0 0.0
    %294 = vmatpush2.msra.mxu0 0.0
    %295 = vmatprep.subr.mxu0 0.0
    %296 = vmatpush2.msra.mxu0 0.0
    %297 = vmatprep.subr.mxu0 0.0
    %298 = vmatpush2.msra.mxu0 0.0
    %299 = vmatprep.subr.mxu0 0.0
    %300 = vmatpush2.msra.mxu0 0.0
    %301 = vmatprep.subr.mxu0 0.0
    %302 = vmatpush2.msra.mxu0 0.0
    %303 = vmatprep.mubr.f32.mxu0 0.0
    %304 = vmatmul.mubr.f32.gmra.mxu0 %v234
    %v305 = vpop.f32.mrf.mxu0
    %v306 = vadd.f32 0.0, %v305
    %v307 = vpop.f32.mrf.mxu0
    %308 = vmatprep.mubr.f32.mxu0 0.0
    %309 = vmatmul.mubr.f32.gmra.mxu0 %v237
    %v310 = vpop.f32.mrf.mxu0
    %v311 = vadd.f32 0.0, %v310
    %v312 = vpop.f32.mrf.mxu0
    %313 = vdwg.mxu0
    %v314 = vld [vmem:[#allocation2 + $0x78] sm:$0xff]
    %v315 = vld [vmem:[#allocation2 + $0x80] sm:$0xff]
    %v316 = vld [vmem:[#allocation2 + $0x88] sm:$0xff]
    %v317 = vld [vmem:[#allocation2 + $0x90] sm:$0xff]
    %v318 = vld [vmem:[#allocation2 + $0x98] sm:$0xff]
    %v319 = vld [vmem:[#allocation2 + $0xa0] sm:$0xff]
    %v320 = vld [vmem:[#allocation2 + $0xa8] sm:$0xff]
    %v321 = vld [vmem:[#allocation2 + $0xb0] sm:$0xff]
    %v322 = vld [vmem:[#allocation2 + $0xb8] sm:$0xff]
    %v323 = vld [vmem:[#allocation2 + $0xc0] sm:$0xff]
    %v325 = vsel %vm128, %v306, 0
    %v328 = vsel %vm128, %v311, 0
    %330 = vmatprep.subr.mxu0 0.0
    %331 = vmatpush1.msra.mxu0 0.0
    %332 = vmatprep.subr.mxu0 0.0
    %333 = vmatpush1.msra.mxu0 0.0
    %334 = vmatprep.subr.mxu0 0.0
    %335 = vmatpush1.msra.mxu0 0.0
    %336 = vmatprep.subr.mxu0 0.0
    %337 = vmatpush1.msra.mxu0 0.0
    %338 = vmatprep.subr.mxu0 0.0
    %339 = vmatpush1.msra.mxu0 0.0
    %340 = vmatprep.subr.mxu0 0.0
    %341 = vmatpush1.msra.mxu0 0.0
    %342 = vmatprep.subr.mxu0 0.0
    %343 = vmatpush1.msra.mxu0 0.0
    %344 = vmatprep.subr.mxu0 0.0
    %345 = vmatpush1.msra.mxu0 0.0
    %346 = vmatprep.subr.mxu0 0.0
    %347 = vmatpush1.msra.mxu0 %v321
    %348 = vmatprep.subr.mxu0 0.0
    %349 = vmatpush1.msra.mxu0 %v320
    %350 = vmatprep.subr.mxu0 0.0
    %351 = vmatpush1.msra.mxu0 %v319
    %352 = vmatprep.subr.mxu0 0.0
    %353 = vmatpush1.msra.mxu0 %v318
    %354 = vmatprep.subr.mxu0 0.0
    %355 = vmatpush1.msra.mxu0 %v317
    %356 = vmatprep.subr.mxu0 0.0
    %357 = vmatpush1.msra.mxu0 %v316
    %358 = vmatprep.subr.mxu0 0.0
    %359 = vmatpush1.msra.mxu0 %v315
    %360 = vmatprep.subr.mxu0 0.0
    %361 = vmatpush1.msra.mxu0 %v314
    %362 = vmatprep.subr.mxu0 0.0
    %363 = vmatpush2.msra.mxu0 0.0
    %364 = vmatprep.subr.mxu0 0.0
    %365 = vmatpush2.msra.mxu0 0.0
    %366 = vmatprep.subr.mxu0 0.0
    %367 = vmatpush2.msra.mxu0 0.0
    %368 = vmatprep.subr.mxu0 0.0
    %369 = vmatpush2.msra.mxu0 0.0
    %370 = vmatprep.subr.mxu0 0.0
    %371 = vmatpush2.msra.mxu0 0.0
    %372 = vmatprep.subr.mxu0 0.0
    %373 = vmatpush2.msra.mxu0 0.0
    %374 = vmatprep.subr.mxu0 0.0
    %375 = vmatpush2.msra.mxu0 0.0
    %376 = vmatprep.subr.mxu0 0.0
    %377 = vmatpush2.msra.mxu0 0.0
    %378 = vmatprep.subr.mxu0 0.0
    %379 = vmatpush2.msra.mxu0 0.0
    %380 = vmatprep.subr.mxu0 0.0
    %381 = vmatpush2.msra.mxu0 0.0
    %382 = vmatprep.subr.mxu0 0.0
    %383 = vmatpush2.msra.mxu0 0.0
    %384 = vmatprep.subr.mxu0 0.0
    %385 = vmatpush2.msra.mxu0 0.0
    %386 = vmatprep.subr.mxu0 0.0
    %387 = vmatpush2.msra.mxu0 0.0
    %388 = vmatprep.subr.mxu0 0.0
    %389 = vmatpush2.msra.mxu0 0.0
    %390 = vmatprep.subr.mxu0 0.0
    %391 = vmatpush2.msra.mxu0 0.0
    %392 = vmatprep.subr.mxu0 0.0
    %393 = vmatpush2.msra.mxu0 0.0
    %394 = vmatprep.mubr.f32.mxu0 0.0
    %395 = vmatmul.mubr.f32.gmra.mxu0 %v325
    %v396 = vpop.f32.mrf.mxu0
    %v397 = vadd.f32 %v322, %v396
    %v398 = vpop.f32.mrf.mxu0
    %399 = vmatprep.mubr.f32.mxu0 0.0
    %400 = vmatmul.mubr.f32.gmra.mxu0 %v328
    %v401 = vpop.f32.mrf.mxu0
    %v402 = vadd.f32 %v323, %v401
    %v403 = vpop.f32.mrf.mxu0
    %404 = vdwg.mxu0
    %v405 = vmax.f32 %v397, 0.0
    %v406 = vmax.f32 %v402, 0.0
    %409 = vrot.lane.b32.xlu0 %v405, 64
    %v410 = vpop.permute.xlu0 %409
    %411 = vrot.lane.b32.xlu0 %v406, 64
    %v412 = vpop.permute.xlu0 %411
    %v415 = vadd.f32 %v220, %v410
    %v416 = vadd.f32 %v221, %v412
    %v417 = vld [vmem:[#allocation2 + $0xc8] sm:$0xff]
    %v418 = vld [vmem:[#allocation2 + $0xd0] sm:$0xff]
    %421 = vrot.lane.b32.xlu0 %v415, 64
    %v422 = vpop.permute.xlu0 %421
    %423 = vrot.lane.b32.xlu0 %v416, 64
    %v424 = vpop.permute.xlu0 %423
    %v428 = vsel %vm232, %v417, 0
    %v431 = vsel %vm232, %v418, 0
    %433 = vmatprep.subr.mxu0 0.0
    %434 = vmatpush1.msra.mxu0 0.0
    %435 = vmatprep.subr.mxu0 0.0
    %436 = vmatpush1.msra.mxu0 0.0
    %437 = vmatprep.subr.mxu0 0.0
    %438 = vmatpush1.msra.mxu0 0.0
    %439 = vmatprep.subr.mxu0 0.0
    %440 = vmatpush1.msra.mxu0 0.0
    %441 = vmatprep.subr.mxu0 0.0
    %442 = vmatpush1.msra.mxu0 0.0
    %443 = vmatprep.subr.mxu0 0.0
    %444 = vmatpush1.msra.mxu0 0.0
    %445 = vmatprep.subr.mxu0 0.0
    %446 = vmatpush1.msra.mxu0 0.0
    %447 = vmatprep.subr.mxu0 0.0
    %448 = vmatpush1.msra.mxu0 0.0
    %449 = vmatprep.subr.mxu0 0.0
    %450 = vmatpush1.msra.mxu0 0.0
    %451 = vmatprep.subr.mxu0 0.0
    %452 = vmatpush1.msra.mxu0 0.0
    %453 = vmatprep.subr.mxu0 0.0
    %454 = vmatpush1.msra.mxu0 0.0
    %455 = vmatprep.subr.mxu0 0.0
    %456 = vmatpush1.msra.mxu0 0.0
    %457 = vmatprep.subr.mxu0 0.0
    %458 = vmatpush1.msra.mxu0 0.0
    %459 = vmatprep.subr.mxu0 0.0
    %460 = vmatpush1.msra.mxu0 0.0
    %461 = vmatprep.subr.mxu0 0.0
    %462 = vmatpush1.msra.mxu0 %v424
    %463 = vmatprep.subr.mxu0 0.0
    %464 = vmatpush1.msra.mxu0 %v422
    %465 = vmatprep.subr.mxu0 0.0
    %466 = vmatpush2.msra.mxu0 0.0
    %467 = vmatprep.subr.mxu0 0.0
    %468 = vmatpush2.msra.mxu0 0.0
    %469 = vmatprep.subr.mxu0 0.0
    %470 = vmatpush2.msra.mxu0 0.0
    %471 = vmatprep.subr.mxu0 0.0
    %472 = vmatpush2.msra.mxu0 0.0
    %473 = vmatprep.subr.mxu0 0.0
    %474 = vmatpush2.msra.mxu0 0.0
    %475 = vmatprep.subr.mxu0 0.0
    %476 = vmatpush2.msra.mxu0 0.0
    %477 = vmatprep.subr.mxu0 0.0
    %478 = vmatpush2.msra.mxu0 0.0
    %479 = vmatprep.subr.mxu0 0.0
    %480 = vmatpush2.msra.mxu0 0.0
    %481 = vmatprep.subr.mxu0 0.0
    %482 = vmatpush2.msra.mxu0 0.0
    %483 = vmatprep.subr.mxu0 0.0
    %484 = vmatpush2.msra.mxu0 0.0
    %485 = vmatprep.subr.mxu0 0.0
    %486 = vmatpush2.msra.mxu0 0.0
    %487 = vmatprep.subr.mxu0 0.0
    %488 = vmatpush2.msra.mxu0 0.0
    %489 = vmatprep.subr.mxu0 0.0
    %490 = vmatpush2.msra.mxu0 0.0
    %491 = vmatprep.subr.mxu0 0.0
    %492 = vmatpush2.msra.mxu0 0.0
    %493 = vmatprep.subr.mxu0 0.0
    %494 = vmatpush2.msra.mxu0 0.0
    %495 = vmatprep.subr.mxu0 0.0
    %496 = vmatpush2.msra.mxu0 0.0
    %497 = vmatprep.mubr.f32.mxu0 0.0
    %498 = vmatmul.mubr.f32.gmra.mxu0 %v428
    %v499 = vpop.f32.mrf.mxu0
    %v500 = vadd.f32 0.0, %v499
    %v501 = vpop.f32.mrf.mxu0
    %502 = vmatprep.mubr.f32.mxu0 0.0
    %503 = vmatmul.mubr.f32.gmra.mxu0 %v431
    %v504 = vpop.f32.mrf.mxu0
    %v505 = vadd.f32 0.0, %v504
    %v506 = vpop.f32.mrf.mxu0
    %507 = vdwg.mxu0
    %v508 = vld [vmem:[#allocation2 + $0xd8] sm:$0xff]
    %v509 = vld [vmem:[#allocation2 + $0xe0] sm:$0xff]
    %v510 = vld [vmem:[#allocation2 + $0xe8] sm:$0xff]
    %v511 = vld [vmem:[#allocation2 + $0xf0] sm:$0xff]
    %v512 = vld [vmem:[#allocation2 + $0xf8] sm:$0xff]
    %v513 = vld [vmem:[#allocation2 + $0x100] sm:$0xff]
    %v514 = vld [vmem:[#allocation2 + $0x108] sm:$0xff]
    %v515 = vld [vmem:[#allocation2 + $0x110] sm:$0xff]
    %v516 = vld [vmem:[#allocation2 + $0x118] sm:$0xff]
    %v517 = vld [vmem:[#allocation2 + $0x120] sm:$0xff]
    %v519 = vsel %vm128, %v500, 0
    %v522 = vsel %vm128, %v505, 0
    %524 = vmatprep.subr.mxu0 0.0
    %525 = vmatpush1.msra.mxu0 0.0
    %526 = vmatprep.subr.mxu0 0.0
    %527 = vmatpush1.msra.mxu0 0.0
    %528 = vmatprep.subr.mxu0 0.0
    %529 = vmatpush1.msra.mxu0 0.0
    %530 = vmatprep.subr.mxu0 0.0
    %531 = vmatpush1.msra.mxu0 0.0
    %532 = vmatprep.subr.mxu0 0.0
    %533 = vmatpush1.msra.mxu0 0.0
    %534 = vmatprep.subr.mxu0 0.0
    %535 = vmatpush1.msra.mxu0 0.0
    %536 = vmatprep.subr.mxu0 0.0
    %537 = vmatpush1.msra.mxu0 0.0
    %538 = vmatprep.subr.mxu0 0.0
    %539 = vmatpush1.msra.mxu0 0.0
    %540 = vmatprep.subr.mxu0 0.0
    %541 = vmatpush1.msra.mxu0 %v515
    %542 = vmatprep.subr.mxu0 0.0
    %543 = vmatpush1.msra.mxu0 %v514
    %544 = vmatprep.subr.mxu0 0.0
    %545 = vmatpush1.msra.mxu0 %v513
    %546 = vmatprep.subr.mxu0 0.0
    %547 = vmatpush1.msra.mxu0 %v512
    %548 = vmatprep.subr.mxu0 0.0
    %549 = vmatpush1.msra.mxu0 %v511
    %550 = vmatprep.subr.mxu0 0.0
    %551 = vmatpush1.msra.mxu0 %v510
    %552 = vmatprep.subr.mxu0 0.0
    %553 = vmatpush1.msra.mxu0 %v509
    %554 = vmatprep.subr.mxu0 0.0
    %555 = vmatpush1.msra.mxu0 %v508
    %556 = vmatprep.subr.mxu0 0.0
    %557 = vmatpush2.msra.mxu0 0.0
    %558 = vmatprep.subr.mxu0 0.0
    %559 = vmatpush2.msra.mxu0 0.0
    %560 = vmatprep.subr.mxu0 0.0
    %561 = vmatpush2.msra.mxu0 0.0
    %562 = vmatprep.subr.mxu0 0.0
    %563 = vmatpush2.msra.mxu0 0.0
    %564 = vmatprep.subr.mxu0 0.0
    %565 = vmatpush2.msra.mxu0 0.0
    %566 = vmatprep.subr.mxu0 0.0
    %567 = vmatpush2.msra.mxu0 0.0
    %568 = vmatprep.subr.mxu0 0.0
    %569 = vmatpush2.msra.mxu0 0.0
    %570 = vmatprep.subr.mxu0 0.0
    %571 = vmatpush2.msra.mxu0 0.0
    %572 = vmatprep.subr.mxu0 0.0
    %573 = vmatpush2.msra.mxu0 0.0
    %574 = vmatprep.subr.mxu0 0.0
    %575 = vmatpush2.msra.mxu0 0.0
    %576 = vmatprep.subr.mxu0 0.0
    %577 = vmatpush2.msra.mxu0 0.0
    %578 = vmatprep.subr.mxu0 0.0
    %579 = vmatpush2.msra.mxu0 0.0
    %580 = vmatprep.subr.mxu0 0.0
    %581 = vmatpush2.msra.mxu0 0.0
    %582 = vmatprep.subr.mxu0 0.0
    %583 = vmatpush2.msra.mxu0 0.0
    %584 = vmatprep.subr.mxu0 0.0
    %585 = vmatpush2.msra.mxu0 0.0
    %586 = vmatprep.subr.mxu0 0.0
    %587 = vmatpush2.msra.mxu0 0.0
    %588 = vmatprep.mubr.f32.mxu0 0.0
    %589 = vmatmul.mubr.f32.gmra.mxu0 %v519
    %v590 = vpop.f32.mrf.mxu0
    %v591 = vadd.f32 %v516, %v590
    %v592 = vpop.f32.mrf.mxu0
    %593 = vmatprep.mubr.f32.mxu0 0.0
    %594 = vmatmul.mubr.f32.gmra.mxu0 %v522
    %v595 = vpop.f32.mrf.mxu0
    %v596 = vadd.f32 %v517, %v595
    %v597 = vpop.f32.mrf.mxu0
    %598 = vdwg.mxu0
    %v599 = vmax.f32 %v591, 0.0
    %v600 = vmax.f32 %v596, 0.0
    %603 = vrot.lane.b32.xlu0 %v599, 64
    %v604 = vpop.permute.xlu0 %603
    %605 = vrot.lane.b32.xlu0 %v600, 64
    %v606 = vpop.permute.xlu0 %605
    %v609 = vadd.f32 %v415, %v604
    %v610 = vadd.f32 %v416, %v606
    %v611 = vld [vmem:[#allocation2 + $0x128] sm:$0xff]
    %v612 = vld [vmem:[#allocation2 + $0x130] sm:$0xff]
    %v613 = vld [vmem:[#allocation2 + $0x138] sm:$0xff]
    %v614 = vld [vmem:[#allocation2 + $0x140] sm:$0xff]
    %v615 = vld [vmem:[#allocation2 + $0x148] sm:$0xff]
    %v616 = vld [vmem:[#allocation2 + $0x150] sm:$0xff]
    %v617 = vld [vmem:[#allocation2 + $0x158] sm:$0xff]
    %v618 = vld [vmem:[#allocation2 + $0x160] sm:$0xff]
    %v619 = vld [vmem:[#allocation2 + $0x168] sm:$0x1]
    %v620 = vlaneseq
    %v621 = vshrl.u32 %v620, 7
    %v622 = vsub.s32 0, %v621
    %v623 = vrot.slane %v619, %v622
    %626 = vrot.lane.b32.xlu0 %v609, 64
    %v627 = vpop.permute.xlu0 %626
    %628 = vrot.lane.b32.xlu0 %v610, 64
    %v629 = vpop.permute.xlu0 %628
    %v630 = vsel %vm128, %v627, 0
    %v632 = vsel %vm128, %v629, 0
    %634 = vmatprep.subr.mxu0 0.0
    %635 = vmatpush1.msra.mxu0 0.0
    %636 = vmatprep.subr.mxu0 0.0
    %637 = vmatpush1.msra.mxu0 0.0
    %638 = vmatprep.subr.mxu0 0.0
    %639 = vmatpush1.msra.mxu0 0.0
    %640 = vmatprep.subr.mxu0 0.0
    %641 = vmatpush1.msra.mxu0 0.0
    %642 = vmatprep.subr.mxu0 0.0
    %643 = vmatpush1.msra.mxu0 0.0
    %644 = vmatprep.subr.mxu0 0.0
    %645 = vmatpush1.msra.mxu0 0.0
    %646 = vmatprep.subr.mxu0 0.0
    %647 = vmatpush1.msra.mxu0 0.0
    %648 = vmatprep.subr.mxu0 0.0
    %649 = vmatpush1.msra.mxu0 0.0
    %650 = vmatprep.subr.mxu0 0.0
    %651 = vmatpush1.msra.mxu0 %v618
    %652 = vmatprep.subr.mxu0 0.0
    %653 = vmatpush1.msra.mxu0 %v617
    %654 = vmatprep.subr.mxu0 0.0
    %655 = vmatpush1.msra.mxu0 %v616
    %656 = vmatprep.subr.mxu0 0.0
    %657 = vmatpush1.msra.mxu0 %v615
    %658 = vmatprep.subr.mxu0 0.0
    %659 = vmatpush1.msra.mxu0 %v614
    %660 = vmatprep.subr.mxu0 0.0
    %661 = vmatpush1.msra.mxu0 %v613
    %662 = vmatprep.subr.mxu0 0.0
    %663 = vmatpush1.msra.mxu0 %v612
    %664 = vmatprep.subr.mxu0 0.0
    %665 = vmatpush1.msra.mxu0 %v611
    %666 = vmatprep.subr.mxu0 0.0
    %667 = vmatpush2.msra.mxu0 0.0
    %668 = vmatprep.subr.mxu0 0.0
    %669 = vmatpush2.msra.mxu0 0.0
    %670 = vmatprep.subr.mxu0 0.0
    %671 = vmatpush2.msra.mxu0 0.0
    %672 = vmatprep.subr.mxu0 0.0
    %673 = vmatpush2.msra.mxu0 0.0
    %674 = vmatprep.subr.mxu0 0.0
    %675 = vmatpush2.msra.mxu0 0.0
    %676 = vmatprep.subr.mxu0 0.0
    %677 = vmatpush2.msra.mxu0 0.0
    %678 = vmatprep.subr.mxu0 0.0
    %679 = vmatpush2.msra.mxu0 0.0
    %680 = vmatprep.subr.mxu0 0.0
    %681 = vmatpush2.msra.mxu0 0.0
    %682 = vmatprep.subr.mxu0 0.0
    %683 = vmatpush2.msra.mxu0 0.0
    %684 = vmatprep.subr.mxu0 0.0
    %685 = vmatpush2.msra.mxu0 0.0
    %686 = vmatprep.subr.mxu0 0.0
    %687 = vmatpush2.msra.mxu0 0.0
    %688 = vmatprep.subr.mxu0 0.0
    %689 = vmatpush2.msra.mxu0 0.0
    %690 = vmatprep.subr.mxu0 0.0
    %691 = vmatpush2.msra.mxu0 0.0
    %692 = vmatprep.subr.mxu0 0.0
    %693 = vmatpush2.msra.mxu0 0.0
    %694 = vmatprep.subr.mxu0 0.0
    %695 = vmatpush2.msra.mxu0 0.0
    %696 = vmatprep.subr.mxu0 0.0
    %697 = vmatpush2.msra.mxu0 0.0
    %698 = vmatprep.mubr.f32.mxu0 0.0
    %699 = vmatmul.mubr.f32.gmra.mxu0 %v630
    %v700 = vpop.f32.mrf.mxu0
    %v701 = vadd.f32 %v623, %v700
    %v702 = vpop.f32.mrf.mxu0
    %703 = vmatprep.mubr.f32.mxu0 0.0
    %704 = vmatmul.mubr.f32.gmra.mxu0 %v632
    %v705 = vpop.f32.mrf.mxu0
    %v706 = vadd.f32 %v623, %v705
    %v707 = vpop.f32.mrf.mxu0
    %708 = vdwg.mxu0
    %v709 = vxor.u32 %v701, 2147483648
    %v710 = vxor.u32 %v706, 2147483648
    %v711 = vmul.f32 %v709, 1.442695
    %v712 = vpow.pop %v711
    %v713 = vmul.f32 %v710, 1.442695
    %v714 = vpow.pop %v713
    %v715 = vadd.f32 %v712, 1.0
    %v716 = vadd.f32 %v714, 1.0
    %v717 = vrcp.pop %v715
    %v718 = vmul.f32 1.0, %v717
    %v719 = vrcp.pop %v716
    %v720 = vmul.f32 1.0, %v719
    %v721 = vsel %vm128, %v227, %v220
    %v722 = vsel %vm128, %v229, %v221
    %v723 = vmul.f32 %v718, %v721
    %v724 = vmul.f32 %v720, %v722
    %v725 = vld [vmem:[#allocation2 + $0x170] sm:$0xff]
    %v726 = vld [vmem:[#allocation2 + $0x178] sm:$0xff]
    %v727 = vld [vmem:[#allocation2 + $0x180] sm:$0xff]
    %v728 = vld [vmem:[#allocation2 + $0x188] sm:$0xff]
    %v729 = vld [vmem:[#allocation2 + $0x190] sm:$0xff]
    %v730 = vld [vmem:[#allocation2 + $0x198] sm:$0xff]
    %v731 = vld [vmem:[#allocation2 + $0x1a0] sm:$0xff]
    %v732 = vld [vmem:[#allocation2 + $0x1a8] sm:$0xff]
    %v733 = vld [vmem:[#allocation2 + $0x1b0] sm:$0xff]
    %v734 = vld [vmem:[#allocation2 + $0x1b8] sm:$0xff]
    %v735 = vld [vmem:[#allocation2 + $0x1c0] sm:$0xff]
    %v736 = vld [vmem:[#allocation2 + $0x1c8] sm:$0xff]
    %v737 = vld [vmem:[#allocation2 + $0x1d0] sm:$0xff]
    %v738 = vld [vmem:[#allocation2 + $0x1d8] sm:$0xff]
    %v739 = vld [vmem:[#allocation2 + $0x1e0] sm:$0xff]
    %v740 = vld [vmem:[#allocation2 + $0x1e8] sm:$0xff]
    %v741 = vld [vmem:[#allocation2 + $0x1f0] sm:$0x1]
    %v742 = vlaneseq
    %v743 = vshrl.u32 %v742, 7
    %v744 = vsub.s32 0, %v743
    %v745 = vrot.slane %v741, %v744
    %746 = vmatprep.subr.mxu0 0.0
    %747 = vmatpush1.msra.mxu0 %v740
    %748 = vmatprep.subr.mxu0 0.0
    %749 = vmatpush1.msra.mxu0 %v739
    %750 = vmatprep.subr.mxu0 0.0
    %751 = vmatpush1.msra.mxu0 %v738
    %752 = vmatprep.subr.mxu0 0.0
    %753 = vmatpush1.msra.mxu0 %v737
    %754 = vmatprep.subr.mxu0 0.0
    %755 = vmatpush1.msra.mxu0 %v736
    %756 = vmatprep.subr.mxu0 0.0
    %757 = vmatpush1.msra.mxu0 %v735
    %758 = vmatprep.subr.mxu0 0.0
    %759 = vmatpush1.msra.mxu0 %v734
    %760 = vmatprep.subr.mxu0 0.0
    %761 = vmatpush1.msra.mxu0 %v733
    %762 = vmatprep.subr.mxu0 0.0
    %763 = vmatpush1.msra.mxu0 %v732
    %764 = vmatprep.subr.mxu0 0.0
    %765 = vmatpush1.msra.mxu0 %v731
    %766 = vmatprep.subr.mxu0 0.0
    %767 = vmatpush1.msra.mxu0 %v730
    %768 = vmatprep.subr.mxu0 0.0
    %769 = vmatpush1.msra.mxu0 %v729
    %770 = vmatprep.subr.mxu0 0.0
    %771 = vmatpush1.msra.mxu0 %v728
    %772 = vmatprep.subr.mxu0 0.0
    %773 = vmatpush1.msra.mxu0 %v727
    %774 = vmatprep.subr.mxu0 0.0
    %775 = vmatpush1.msra.mxu0 %v726
    %776 = vmatprep.subr.mxu0 0.0
    %777 = vmatpush1.msra.mxu0 %v725
    %778 = vmatprep.subr.mxu0 0.0
    %779 = vmatpush2.msra.mxu0 0.0
    %780 = vmatprep.subr.mxu0 0.0
    %781 = vmatpush2.msra.mxu0 0.0
    %782 = vmatprep.subr.mxu0 0.0
    %783 = vmatpush2.msra.mxu0 0.0
    %784 = vmatprep.subr.mxu0 0.0
    %785 = vmatpush2.msra.mxu0 0.0
    %786 = vmatprep.subr.mxu0 0.0
    %787 = vmatpush2.msra.mxu0 0.0
    %788 = vmatprep.subr.mxu0 0.0
    %789 = vmatpush2.msra.mxu0 0.0
    %790 = vmatprep.subr.mxu0 0.0
    %791 = vmatpush2.msra.mxu0 0.0
    %792 = vmatprep.subr.mxu0 0.0
    %793 = vmatpush2.msra.mxu0 0.0
    %794 = vmatprep.subr.mxu0 0.0
    %795 = vmatpush2.msra.mxu0 0.0
    %796 = vmatprep.subr.mxu0 0.0
    %797 = vmatpush2.msra.mxu0 0.0
    %798 = vmatprep.subr.mxu0 0.0
    %799 = vmatpush2.msra.mxu0 0.0
    %800 = vmatprep.subr.mxu0 0.0
    %801 = vmatpush2.msra.mxu0 0.0
    %802 = vmatprep.subr.mxu0 0.0
    %803 = vmatpush2.msra.mxu0 0.0
    %804 = vmatprep.subr.mxu0 0.0
    %805 = vmatpush2.msra.mxu0 0.0
    %806 = vmatprep.subr.mxu0 0.0
    %807 = vmatpush2.msra.mxu0 0.0
    %808 = vmatprep.subr.mxu0 0.0
    %809 = vmatpush2.msra.mxu0 0.0
    %810 = vmatprep.mubr.f32.mxu0 0.0
    %811 = vmatmul.mubr.f32.gmra.mxu0 %v723
    %v812 = vpop.f32.mrf.mxu0
    %v813 = vadd.f32 %v745, %v812
    %v814 = vpop.f32.mrf.mxu0
    %815 = vmatprep.mubr.f32.mxu0 0.0
    %816 = vmatmul.mubr.f32.gmra.mxu0 %v724
    %v817 = vpop.f32.mrf.mxu0
    %v818 = vadd.f32 %v745, %v817
    %v819 = vpop.f32.mrf.mxu0
    %820 = vdwg.mxu0
    %v821 = vld [vmem:[#allocation2 + $0x1f8] sm:$0xff]
    %v822 = vld [vmem:[#allocation2 + $0x200] sm:$0xff]
    %v823 = vld [vmem:[#allocation2 + $0x208] sm:$0xff]
    %v824 = vld [vmem:[#allocation2 + $0x210] sm:$0xff]
    %827 = vrot.lane.b32.xlu0 %v813, 32
    %v828 = vpop.permute.xlu0 %827
    %829 = vrot.lane.b32.xlu0 %v818, 32
    %v830 = vpop.permute.xlu0 %829
    %833 = vrot.lane.b32.xlu0 %v813, 64
    %v834 = vpop.permute.xlu0 %833
    %835 = vrot.lane.b32.xlu0 %v818, 64
    %v836 = vpop.permute.xlu0 %835
    %839 = vrot.lane.b32.xlu0 %v813, 96
    %v840 = vpop.permute.xlu0 %839
    %841 = vrot.lane.b32.xlu0 %v818, 96
    %v842 = vpop.permute.xlu0 %841
    %v845 = vsel %vm36, %v813, %v828
    %v846 = vsel %vm36, %v818, %v830
    %v847 = vsel %vm128, %v845, %v834
    %v848 = vsel %vm128, %v846, %v836
    %vm849 = vcmask 785408
    %v850 = vsel %vm849, %v847, %v840
    %v851 = vsel %vm849, %v848, %v842
    %v852 = vmul.f32 %v850, %v821
    %v853 = vmul.f32 %v850, %v823
    %v854 = vmul.f32 %v851, %v822
    %v855 = vmul.f32 %v851, %v824
    %v856 = vsel %vm36, %v840, %v813
    %v857 = vsel %vm36, %v842, %v818
    %v858 = vsel %vm128, %v856, %v828
    %v859 = vsel %vm128, %v857, %v830
    %v860 = vsel %vm849, %v858, %v834
    %v861 = vsel %vm849, %v859, %v836
    %v862 = vmul.f32 %v860, %v821
    %v863 = vmul.f32 %v860, %v823
    %v864 = vmul.f32 %v861, %v822
    %v865 = vmul.f32 %v861, %v824
    %v866 = vld [vmem:[#allocation2 + $0x218] sm:$0xf]
    %v868 = vsel %vm36, %v866, 0
    %870 = vmatprep.subr.mxu0 0.0
    %871 = vmatpush1.msra.mxu0 0.0
    %872 = vmatprep.subr.mxu0 0.0
    %873 = vmatpush1.msra.mxu0 0.0
    %874 = vmatprep.subr.mxu0 0.0
    %875 = vmatpush1.msra.mxu0 0.0
    %876 = vmatprep.subr.mxu0 0.0
    %877 = vmatpush1.msra.mxu0 0.0
    %878 = vmatprep.subr.mxu0 0.0
    %879 = vmatpush1.msra.mxu0 0.0
    %880 = vmatprep.subr.mxu0 0.0
    %881 = vmatpush1.msra.mxu0 0.0
    %882 = vmatprep.subr.mxu0 0.0
    %883 = vmatpush1.msra.mxu0 0.0
    %884 = vmatprep.subr.mxu0 0.0
    %885 = vmatpush1.msra.mxu0 0.0
    %886 = vmatprep.subr.mxu0 0.0
    %887 = vmatpush1.msra.mxu0 0.0
    %888 = vmatprep.subr.mxu0 0.0
    %889 = vmatpush1.msra.mxu0 0.0
    %890 = vmatprep.subr.mxu0 0.0
    %891 = vmatpush1.msra.mxu0 0.0
    %892 = vmatprep.subr.mxu0 0.0
    %893 = vmatpush1.msra.mxu0 0.0
    %894 = vmatprep.subr.mxu0 %v865
    %895 = vmatpush1.msra.mxu0 %v864
    %896 = vmatprep.subr.mxu0 %v863
    %897 = vmatpush1.msra.mxu0 %v862
    %898 = vmatprep.subr.mxu0 %v855
    %899 = vmatpush1.msra.mxu0 %v854
    %900 = vmatprep.subr.mxu0 %v853
    %901 = vmatpush1.msra.mxu0 %v852
    %902 = vmatprep.subr.mxu0 0.0
    %903 = vmatpush2.msra.mxu0 0.0
    %904 = vmatprep.subr.mxu0 0.0
    %905 = vmatpush2.msra.mxu0 0.0
    %906 = vmatprep.subr.mxu0 0.0
    %907 = vmatpush2.msra.mxu0 0.0
    %908 = vmatprep.subr.mxu0 0.0
    %909 = vmatpush2.msra.mxu0 0.0
    %910 = vmatprep.subr.mxu0 0.0
    %911 = vmatpush2.msra.mxu0 0.0
    %912 = vmatprep.subr.mxu0 0.0
    %913 = vmatpush2.msra.mxu0 0.0
    %914 = vmatprep.subr.mxu0 0.0
    %915 = vmatpush2.msra.mxu0 0.0
    %916 = vmatprep.subr.mxu0 0.0
    %917 = vmatpush2.msra.mxu0 0.0
    %918 = vmatprep.subr.mxu0 0.0
    %919 = vmatpush2.msra.mxu0 0.0
    %920 = vmatprep.subr.mxu0 0.0
    %921 = vmatpush2.msra.mxu0 0.0
    %922 = vmatprep.subr.mxu0 0.0
    %923 = vmatpush2.msra.mxu0 0.0
    %924 = vmatprep.subr.mxu0 0.0
    %925 = vmatpush2.msra.mxu0 0.0
    %926 = vmatprep.subr.mxu0 0.0
    %927 = vmatpush2.msra.mxu0 0.0
    %928 = vmatprep.subr.mxu0 0.0
    %929 = vmatpush2.msra.mxu0 0.0
    %930 = vmatprep.subr.mxu0 0.0
    %931 = vmatpush2.msra.mxu0 0.0
    %932 = vmatprep.subr.mxu0 0.0
    %933 = vmatpush2.msra.mxu0 0.0
    %934 = vmatprep.mubr.f32.mxu0 0.0
    %935 = vmatmul.mubr.f32.gmra.mxu0 %v868
    %v936 = vpop.f32.mrf.mxu0
    %v937 = vadd.f32 0.0, %v936
    %v938 = vpop.f32.mrf.mxu0
    %v939 = vadd.f32 0.0, %v938
    %940 = vdwg.mxu0
    %v943 = vcombine.low %v937, %v939
    %945 = vst [vmem:[%s2] sm:$0xff] %v943
    // Predicated region
    $region14: #{combined_forward.1} parent=1 // pred_check
      _
    $region15: #{combined_forward.1} parent=1 // pred_check_branch
      %947 = sbr.rel (0) target = $region17
    $region16: #{combined_forward.1} parent=1 // pred_region
      _
    $region17: #{combined_forward.1} parent=1 // pred_fallthru
      _
    // Predicated region
    $region18: #{combined_forward.1} parent=1 // pred_check
      _
    $region19: #{combined_forward.1} parent=1 // pred_check_branch
      %949 = sbr.rel (0) target = $region21
    $region20: #{combined_forward.1} parent=1 // pred_region
      _
    $region21: #{combined_forward.1} parent=1 // pred_fallthru
      _
    %950 = vsyncpa [#allocation3], 1

</llo_original>
